<compile_context>
chip_gen: v5e
topology: v5e:2x2
jax: 0.10.0
libtpu: 0.0.40
codegen_flags: <defaults>
</compile_context>

<pallas_src>
import jax
import jax.numpy as jnp
from jax.experimental import pallas as pl
from jax.experimental.pallas import tpu as pltpu

_MiB = 1024 * 1024


def _round_up(x, m):
    return ((x + m - 1) // m) * m


def _cdiv(a, b):
    return (a + b - 1) // b


def _vmem_limit_bytes():
    """Generation-aware scoped-VMEM limit with headroom."""
    try:
        info = pltpu.get_tpu_info()
        cap = int(getattr(info, "vmem_capacity_bytes", 0))
    except Exception:  # not on TPU / API unavailable
        cap = 0
    if cap <= 0:
        cap = 64 * _MiB  # conservative: v7x per-TC physical VMEM
    # v7x (64 MiB): 16 MiB headroom -> 48 MiB.  v5e/v6e (128 MiB): ~96 MiB.
    return max(32 * _MiB, min(cap - 16 * _MiB, (3 * cap) // 4))


def _pick_tile(B, C, HW, in_bytes, out_bytes, vmem_limit, pixel_tile):
    """Block-count-first adaptive tile selection."""
    hw_128 = _round_up(HW, 128)
    # Per pixel-column VMEM footprint: 3x input buffers (Buffered(3)),
    # 2x output buffers, ~8 B/elem of f32 elementwise temporaries, plus the
    # small (B, 8, P) f32 statistics temporaries.
    per_px = B * C * (3 * in_bytes + 2 * out_bytes + 8) + B * 8 * 4 * 6
    budget = int(0.6 * vmem_limit)
    tile_cap = max(128, (budget // per_px) // 128 * 128)
    if pixel_tile is not None:
        tile_cap = min(tile_cap, max(128, _round_up(int(pixel_tile), 128)))
    tile_cap = min(tile_cap, hw_128)
    # >=2 (ideally 4) grid steps so the "parallel" pixel axis can shard over
    # v7x's two TensorCores; also bounds padding to < n_blocks * 128 pixels.
    min_blocks = min(4, hw_128 // 128)
    n_blocks = max(min_blocks, _cdiv(hw_128, tile_cap))
    tile = max(128, min(tile_cap, _round_up(_cdiv(hw_128, n_blocks), 128)))
    n_blocks = _cdiv(hw_128, tile)
    hw_pad = n_blocks * tile
    return tile, n_blocks, hw_pad


def _sla_kernel(x_ref, vw_ref, s_ref, o_ref):
    # x_ref : (B, C, P)  input-dtype VMEM block of pixels
    # vw_ref: (8, C)     x-dtype VMEM; row0 = mean_i W[i,:], row1 = 1/C, rest 0
    # s_ref : (1,)       f32 SMEM; mean of the conv bias
    # o_ref : (B, C, P)
    x = x_ref[...]
    B = x.shape[0]
    b_mean = s_ref[0]
    vw = vw_ref[...]
    vw_b = jnp.broadcast_to(vw[None], (B,) + vw.shape)        # (B, 8, C) tiny

    # One MXU pass computes both channel reductions with f32 accumulation:
    #   row 0 -> channel mean of the (folded) 1x1 conv, row 1 -> channel mean of x.
    stats = jnp.einsum('bdc,bcp->bdp', vw_b, x,
                       preferred_element_type=jnp.float32)    # (B, 8, P) f32

    x2p = stats[:, 0:1, :] + b_mean                           # (B, 1, P)
    x2 = stats[:, 1:2, :]                                     # (B, 1, P)

    # nn.Softmax2d() applied to a 3-D (B, H, W) tensor -> softmax over dim -3,
    # i.e. across the batch dimension (literal PyTorch semantics).
    d = x2p - x2
    m = jnp.max(d, axis=0, keepdims=True)
    e = jnp.exp(d - m)
    raise_ch = e / jnp.sum(e, axis=0, keepdims=True)          # (B, 1, P)

    att = jax.nn.sigmoid(x2p + x2p * raise_ch)                # (B, 1, P) f32

    # TODO(synk): original `torch.einsum('bchw, bc -> bchw', x, att_score)` is
    # dimensionally inconsistent (att_score is (b, h, w), not (b, c)); we
    # implement the intended per-pixel scaling broadcast over channels.
    o_ref[...] = (x.astype(jnp.float32) * att).astype(o_ref.dtype)


def sla_forward(x, w, bias, *, pixel_tile=None):
    """x: (B, C, H, W) NCHW, w: (C, C) 1x1-conv weight, bias: (C,)."""
    B, C, H, W = x.shape
    HW = H * W
    in_bytes = x.dtype.itemsize

    vmem_limit = _vmem_limit_bytes()
    tile, n_blocks, hw_pad = _pick_tile(B, C, HW, in_bytes, in_bytes,
                                        vmem_limit, pixel_tile)

    x_flat = x.reshape(B, C, HW)
    if hw_pad != HW:
        x_flat = jnp.pad(x_flat, ((0, 0), (0, 0), (0, hw_pad - HW)))

    # Fold the pointwise conv: only its channel mean is consumed downstream.
    vw = jnp.zeros((8, C), jnp.float32)
    vw = vw.at[0, :].set(jnp.mean(w.astype(jnp.float32), axis=0))
    vw = vw.at[1, :].set(1.0 / C)
    vw = vw.astype(x.dtype)                                  # native MXU dtype
    b_mean = jnp.mean(bias.astype(jnp.float32)).reshape(1)

    # Deeper input buffering only when the grid is long enough to use it.
    if n_blocks >= 3:
        try:
            x_spec = pl.BlockSpec((B, C, tile), lambda i: (0, 0, i),
                                  pipeline_mode=pl.Buffered(3))
        except TypeError:  # older API without pipeline_mode
            x_spec = pl.BlockSpec((B, C, tile), lambda i: (0, 0, i))
    else:
        x_spec = pl.BlockSpec((B, C, tile), lambda i: (0, 0, i))

    out_flat = pl.pallas_call(
        _sla_kernel,
        out_shape=jax.ShapeDtypeStruct((B, C, hw_pad), x.dtype),
        grid_spec=pltpu.PrefetchScalarGridSpec(
            num_scalar_prefetch=0,
            grid=(n_blocks,),
            in_specs=[
                x_spec,
                # Constant index_map -> Pallas fetches this tiny block once.
                pl.BlockSpec((8, C), lambda i: (0, 0)),
                pl.BlockSpec(memory_space=pltpu.MemorySpace.SMEM),
            ],
            out_specs=pl.BlockSpec((B, C, tile), lambda i: (0, 0, i)),
        ),
        compiler_params=pltpu.CompilerParams(
            dimension_semantics=("parallel",),
            vmem_limit_bytes=vmem_limit,
        ),
    )(x_flat, vw, b_mean)

    if hw_pad != HW:
        out_flat = out_flat[:, :, :HW]
    return out_flat.reshape(B, C, H, W)


def sla_reference(x, w, bias):
    """Pure-JAX reference mirroring the (interpreted) PyTorch forward."""
    x2 = jnp.mean(x, axis=1)                                          # (B, H, W)
    xp = jnp.einsum('ij,bjhw->bihw', w, x) + bias[None, :, None, None]
    x2p = jnp.mean(xp, axis=1)                                        # (B, H, W)
    raise_ch = jax.nn.softmax(x2p - x2, axis=0)                       # softmax over batch
    att = jax.nn.sigmoid(x2p + x2p * raise_ch)
    return x * att[:, None, :, :]


if __name__ == "__main__":
    key = jax.random.PRNGKey(0)
    kx, kw, kb = jax.random.split(key, 3)

    B, C, H, W = 2, 4, 16, 16
    x = jax.random.normal(kx, (B, C, H, W), dtype=jnp.float32)
    # nn.Conv2d(dim, dim, kernel_size=1): weight (C, C, 1, 1) -> (C, C), bias (C,)
    w = jax.random.normal(kw, (C, C), dtype=jnp.float32) * 0.1
    bias = jax.random.normal(kb, (C,), dtype=jnp.float32) * 0.1

    ref = sla_reference(x, w, bias)
    for pt in (None, 128):
        out = jax.block_until_ready(sla_forward(x, w, bias, pixel_tile=pt))
        assert out.shape == (B, C, H, W)
        err = float(jnp.max(jnp.abs(out - ref)))
        assert jnp.allclose(out, ref, atol=2e-5, rtol=2e-5), err

    # Larger spatial extent -> >=4 grid steps, exercises the Buffered(3) path.
    x32 = jax.random.normal(kx, (B, C, 32, 32), dtype=jnp.float32)
    out32 = jax.block_until_ready(sla_forward(x32, w, bias))
    ref32 = sla_reference(x32, w, bias)
    assert jnp.allclose(out32, ref32, atol=2e-5, rtol=2e-5), float(
        jnp.max(jnp.abs(out32 - ref32)))

    # Non-128-multiple spatial size exercises the pad/slice path.
    xb = jax.random.normal(kx, (B, C, 12, 12), dtype=jnp.float32)
    outb = jax.block_until_ready(sla_forward(xb, w, bias))
    refb = sla_reference(xb, w, bias)
    assert jnp.allclose(outb, refb, atol=2e-5, rtol=2e-5), float(
        jnp.max(jnp.abs(outb - refb)))

    print("KERNEL_OK")
</pallas_src>

<mosaic_0001>
module attributes {stable_mosaic.version = 11 : i64} {
  func.func @_sla_kernel(%arg0: i32, %arg1: memref<2x4x128xf32, #tpu.memory_space<vmem>>, %arg2: memref<8x4xf32, #tpu.memory_space<vmem>>, %arg3: memref<1xf32, #tpu.memory_space<smem>>, %arg4: memref<2x4x128xf32, #tpu.memory_space<vmem>>) attributes {dimension_semantics = [#tpu.dimension_semantics<parallel>], iteration_bounds = array<i64: 2>, scalar_prefetch = 0 : i64, scratch_operands = 0 : i64, tpu.core_type = #tpu.core_type<tc>, window_params = [{transform_indices = @transform_0, window_bounds = array<i64: 2, 4, 128>}, {pipeline_mode = #tpu.pipeline_mode<synchronous>, transform_indices = @transform_1, window_bounds = array<i64: 8, 4>}, {transform_indices = @transform_2, window_bounds = array<i64: 1>}, {transform_indices = @transform_3, window_bounds = array<i64: 2, 4, 128>}]} {
    %c0 = arith.constant 0 : index
    %c0_0 = arith.constant 0 : index
    %c0_1 = arith.constant 0 : index
    %0 = vector.load %arg1[%c0, %c0_0, %c0_1] : memref<2x4x128xf32, #tpu.memory_space<vmem>>, vector<2x4x128xf32>
    %c0_2 = arith.constant 0 : index
    %1 = memref.load %arg3[%c0_2] : memref<1xf32, #tpu.memory_space<smem>>
    %c0_3 = arith.constant 0 : index
    %c0_4 = arith.constant 0 : index
    %2 = vector.load %arg2[%c0_3, %c0_4] : memref<8x4xf32, #tpu.memory_space<vmem>>, vector<8x4xf32>
    %3 = vector.shape_cast %2 : vector<8x4xf32> to vector<1x8x4xf32>
    %4 = vector.shape_cast %3 : vector<1x8x4xf32> to vector<1x8x4xf32>
    %5 = vector.broadcast %4 : vector<1x8x4xf32> to vector<2x8x4xf32>
    "tpu.trace_start"() <{level = 10 : i32, message = "bdc,bcp->bdp"}> : () -> ()
    %cst = arith.constant dense<0.000000e+00> : vector<2x8x128xf32>
    %6 = tpu.matmul %5, %0, %cst {dimension_numbers = #tpu.dot_dimension_numbers<[2], [1], [1], [2], [0, 0, 0, 1, 1, 2], [0], [0]>} : vector<2x8x4xf32>, vector<2x4x128xf32>, vector<2x8x128xf32> -> vector<2x8x128xf32>
    "tpu.trace_stop"() : () -> ()
    %7 = vector.extract_strided_slice %6 {offsets = [0, 0, 0], sizes = [2, 1, 128], strides = [1, 1, 1]} : vector<2x8x128xf32> to vector<2x1x128xf32>
    %8 = vector.broadcast %1 : f32 to vector<2x1x128xf32>
    %9 = arith.addf %7, %8 : vector<2x1x128xf32>
    %10 = vector.extract_strided_slice %6 {offsets = [0, 1, 0], sizes = [2, 1, 128], strides = [1, 1, 1]} : vector<2x8x128xf32> to vector<2x1x128xf32>
    %11 = arith.subf %9, %10 : vector<2x1x128xf32>
    %cst_5 = arith.constant dense<0xFF800000> : vector<1x128xf32>
    %12 = vector.multi_reduction <maximumf>, %11, %cst_5 [0] : vector<2x1x128xf32> to vector<1x128xf32>
    %13 = vector.shape_cast %12 : vector<1x128xf32> to vector<1x1x128xf32>
    %14 = vector.broadcast %13 : vector<1x1x128xf32> to vector<2x1x128xf32>
    %15 = arith.subf %11, %14 : vector<2x1x128xf32>
    %16 = math.exp %15 : vector<2x1x128xf32>
    %cst_6 = arith.constant dense<0.000000e+00> : vector<1x128xf32>
    %17 = vector.multi_reduction <add>, %16, %cst_6 [0] : vector<2x1x128xf32> to vector<1x128xf32>
    %18 = vector.shape_cast %17 : vector<1x128xf32> to vector<1x1x128xf32>
    %19 = vector.broadcast %18 : vector<1x1x128xf32> to vector<2x1x128xf32>
    %20 = arith.divf %16, %19 : vector<2x1x128xf32>
    %21 = arith.mulf %9, %20 : vector<2x1x128xf32>
    %22 = arith.addf %9, %21 : vector<2x1x128xf32>
    %23 = arith.negf %22 : vector<2x1x128xf32>
    %24 = math.exp %23 : vector<2x1x128xf32>
    %cst_7 = arith.constant 1.000000e+00 : f32
    %25 = vector.broadcast %cst_7 : f32 to vector<2x1x128xf32>
    %26 = arith.addf %25, %24 : vector<2x1x128xf32>
    %27 = arith.divf %25, %26 : vector<2x1x128xf32>
    %28 = vector.broadcast %27 : vector<2x1x128xf32> to vector<2x4x128xf32>
    %29 = arith.mulf %0, %28 : vector<2x4x128xf32>
    %c0_8 = arith.constant 0 : index
    %c0_9 = arith.constant 0 : index
    %c0_10 = arith.constant 0 : index
    %30 = vector.load %arg4[%c0_8, %c0_9, %c0_10] : memref<2x4x128xf32, #tpu.memory_space<vmem>>, vector<2x4x128xf32>
    tpu.vector_store %arg4[%c0_8, %c0_9, %c0_10], %29 {strides = array<i32>} : memref<2x4x128xf32, #tpu.memory_space<vmem>>, vector<2x4x128xf32>,
    return
  }
  func.func @transform_0(%arg0: i32) -> (i32, i32, i32) {
    %c0_i32 = arith.constant 0 : i32
    %c0_i32_0 = arith.constant 0 : i32
    %c0_i32_1 = arith.constant 0 : i32
    return %c0_i32, %c0_i32_0, %arg0 : i32, i32, i32
  }
  func.func @transform_1(%arg0: i32) -> (i32, i32) {
    %c0_i32 = arith.constant 0 : i32
    %c0_i32_0 = arith.constant 0 : i32
    %c0_i32_1 = arith.constant 0 : i32
    return %c0_i32, %c0_i32_0 : i32, i32
  }
  func.func @transform_2(%arg0: i32) -> i32 {
    %c0_i32 = arith.constant 0 : i32
    %c0_i32_0 = arith.constant 0 : i32
    return %c0_i32 : i32
  }
  func.func @transform_3(%arg0: i32) -> (i32, i32, i32) {
    %c0_i32 = arith.constant 0 : i32
    %c0_i32_0 = arith.constant 0 : i32
    %c0_i32_1 = arith.constant 0 : i32
    return %c0_i32, %c0_i32_0, %arg0 : i32, i32, i32
  }
}

</mosaic_0001>

<llo_original>
// kernel: tpu_custom_call.1
$region0: #{tpu_custom_call.1}
  #allocation0 [shape = 'u32[]', space=smem, size = 0x4, offset = 0x4, fixed_abs, tag = 'smem constant byte address 0x4 - core index']
  #allocation1 [shape = 'u32[72,128]{1,0:T(1,128)}', space=vmem, size = 0x9000, scoped, tag = 'internal scratch']
  #allocation2 [shape = 'f32[1]{0:T(128)S(6)}', space=smem, size = 0x200, scoped, tag = 'scoped memory for tpu_custom_call.1']
  %s0 = inlined_call_operand.hbm [shape: f32[2,4,256], index: 0, kind: input, shape index: {}]
  %s1 = inlined_call_operand.vmem [shape: f32[8,4], index: 1, kind: input, shape index: {}]
  %s2 = inlined_call_operand.<no memory space> [shape: f32[1], index: 2, kind: input, shape index: {}]
  %s3 = inlined_call_operand.hbm [shape: f32[2,4,256], index: 3, kind: output, shape index: {}]
  %s4 = sld [smem:[#allocation0]]
  $region49: #{tpu_custom_call.1} parent=0
    _
  %s6 = ssub.s32 1, %s4
  %s7 = scalar_select 0, %s6, %s4
  %8 = sst [smem:[#allocation2]] %s2
  $region1: #{tpu_custom_call.1} parent=0
    #allocation3 [shape = 'u8[8192]{0}', space=vmem, size = 0x2000, scoped, tag = 'input window, operand 0']
    #allocation4 [shape = 's32[2]{0}', space=sflag, size = 0x8, scoped, tag = 'scoped memory for tpu_custom_call.1']
    #allocation5 [shape = 's32[2]{0}', space=sflag, size = 0x8, scoped, tag = 'scoped memory for tpu_custom_call.1']
    #allocation6 [shape = 'u8[8192]{0}', space=vmem, size = 0x2000, scoped, tag = 'output window, operand 0']
    %9 = vsyncpa [#allocation4], 0
    %s10 = scalar_lea.sflag [#allocation4], 1
    %11 = vsyncpa %s10, 0
    %12 = vsyncpa [#allocation5], 0
    %s13 = scalar_lea.sflag [#allocation5], 1
    %14 = vsyncpa %s13, 0
    loop: start=0, step=1, limit=4
    $region2: #{tpu_custom_call.1} parent=1 // loop_pre_header
      _
    $region3: #{tpu_custom_call.1} parent=1 // loop_header
      %s16 = sphi 0, %s20
      %p17 = scmp.ge.s32.totalorder %s16, 4
      %s26 = sphi 0, %s28
      %s29 = sphi 0, %s26
      %s30 = sphi 0, %s29
      %s46 = sphi 0, %s30
      %s50 = sphi 0, %s50
      %s52 = sphi 0, %s50
      %s53 = sphi 0, %s52
      %s67 = sphi 0, %s53
      %s71 = sphi 0, %s71
      %s73 = sphi 0, %s71
      %s74 = sphi 0, %s73
      %s88 = sphi 0, %s74
      %s94 = sphi 0, %s96
      %s97 = sphi 0, %s94
      %s98 = sphi 0, %s97
      %s114 = sphi 0, %s98
    $region4: #{tpu_custom_call.1} parent=1 // loop_header_branch
      %19 = sbr.rel (%p17) target = $region8
    $region5: #{tpu_custom_call.1} parent=1 // loop_body
      %s21 = ssub.s32 %s16, 1
      %s22 = ssub.s32 %s16, 2
      %s23 = sadd.s32 %s16, 1
      %s24 = ssub.s32 %s16, %s23
      %p25 = scmp.eq.s32.totalorder %s24, 0
      %s27 = sadd.s32 %s26, 1
      %s28 = scalar_select %p25, %s26, %s27
      %p31 = pneg %p25
      %p32 = scmp.eq.s32.totalorder %s16, 1
      %p33 = por %p31, %p32
      %p34 = scmp.ne.s32.totalorder %s26, %s29
      %p35 = scmp.eq.s32.totalorder %s16, 0
      %p36 = por %p34, %p35
      %p37 = scmp.ne.s32.totalorder %s26, %s29
      %p38 = scmp.eq.s32.totalorder %s21, 1
      %p39 = por %p37, %p38
      %p40 = scmp.ne.s32.totalorder %s29, %s30
      %p41 = scmp.eq.s32.totalorder %s21, 0
      %p42 = por %p40, %p41
      %p43 = scmp.ne.s32.totalorder %s29, %s30
      %p44 = scmp.eq.s32.totalorder %s22, 1
      %p45 = por %p43, %p44
      %p47 = scmp.ne.s32.totalorder %s30, %s46
      %p48 = scmp.eq.s32.totalorder %s22, 0
      %p49 = por %p47, %p48
      %s51 = sadd.s32 %s50, 1
      %p54 = scmp.eq.s32.totalorder %s16, 1
      %p55 = scmp.ne.s32.totalorder %s50, %s52
      %p56 = scmp.eq.s32.totalorder %s16, 0
      %p57 = por %p55, %p56
      %p58 = scmp.ne.s32.totalorder %s50, %s52
      %p59 = scmp.eq.s32.totalorder %s21, 1
      %p60 = por %p58, %p59
      %p61 = scmp.ne.s32.totalorder %s52, %s53
      %p62 = scmp.eq.s32.totalorder %s21, 0
      %p63 = por %p61, %p62
      %p64 = scmp.ne.s32.totalorder %s52, %s53
      %p65 = scmp.eq.s32.totalorder %s22, 1
      %p66 = por %p64, %p65
      %p68 = scmp.ne.s32.totalorder %s53, %s67
      %p69 = scmp.eq.s32.totalorder %s22, 0
      %p70 = por %p68, %p69
      %s72 = sadd.s32 %s71, 1
      %p75 = scmp.eq.s32.totalorder %s16, 1
      %p76 = scmp.ne.s32.totalorder %s71, %s73
      %p77 = scmp.eq.s32.totalorder %s16, 0
      %p78 = por %p76, %p77
      %p79 = scmp.ne.s32.totalorder %s71, %s73
      %p80 = scmp.eq.s32.totalorder %s21, 1
      %p81 = por %p79, %p80
      %p82 = scmp.ne.s32.totalorder %s73, %s74
      %p83 = scmp.eq.s32.totalorder %s21, 0
      %p84 = por %p82, %p83
      %p85 = scmp.ne.s32.totalorder %s73, %s74
      %p86 = scmp.eq.s32.totalorder %s22, 1
      %p87 = por %p85, %p86
      %p89 = scmp.ne.s32.totalorder %s74, %s88
      %p90 = scmp.eq.s32.totalorder %s22, 0
      %p91 = por %p89, %p90
      %s92 = ssub.s32 %s16, %s23
      %p93 = scmp.eq.s32.totalorder %s92, 0
      %s95 = sadd.s32 %s94, 1
      %s96 = scalar_select %p93, %s94, %s95
      %p99 = pneg %p93
      %p100 = scmp.eq.s32.totalorder %s16, 1
      %p101 = por %p99, %p100
      %p102 = scmp.ne.s32.totalorder %s94, %s97
      %p103 = scmp.eq.s32.totalorder %s16, 0
      %p104 = por %p102, %p103
      %p105 = scmp.ne.s32.totalorder %s94, %s97
      %p106 = scmp.eq.s32.totalorder %s21, 1
      %p107 = por %p105, %p106
      %p108 = scmp.ne.s32.totalorder %s97, %s98
      %p109 = scmp.eq.s32.totalorder %s21, 0
      %p110 = por %p108, %p109
      %p111 = scmp.ne.s32.totalorder %s97, %s98
      %p112 = scmp.eq.s32.totalorder %s22, 1
      %p113 = por %p111, %p112
      %p115 = scmp.ne.s32.totalorder %s98, %s114
      %p116 = scmp.eq.s32.totalorder %s22, 0
      %p117 = por %p115, %p116
      %p118 = scmp.le.s32.totalorder 1, %s16
      %p119 = scmp.lt.s32.totalorder %s16, 3
      %p120 = pnand %p118, %p119
      %p121 = pneg %p120
      // Predicated region
      $region9: #{tpu_custom_call.1} parent=5 // pred_check
        _
      $region10: #{tpu_custom_call.1} parent=5 // pred_check_branch
        %123 = sbr.rel (%p120) target = $region12
      $region11: #{tpu_custom_call.1} parent=5 // pred_region
        %s124 = ssub.s32 %s16, 1
        // Predicated region
        $region13: #{tpu_custom_call.1} parent=11 // pred_check
          %p125 = pneg %p63
        $region14: #{tpu_custom_call.1} parent=11 // pred_check_branch
          %127 = sbr.rel (%p125) target = $region16
        $region15: #{tpu_custom_call.1} parent=11 // pred_region
          _
        $region16: #{tpu_custom_call.1} parent=11 // pred_fallthru
          _
        // Predicated region
        $region17: #{tpu_custom_call.1} parent=11 // pred_check
          %p128 = pneg %p84
        $region18: #{tpu_custom_call.1} parent=11 // pred_check_branch
          %130 = sbr.rel (%p128) target = $region20
        $region19: #{tpu_custom_call.1} parent=11 // pred_region
          _
        $region20: #{tpu_custom_call.1} parent=11 // pred_fallthru
          _
      $region12: #{tpu_custom_call.1} parent=5 // pred_fallthru
        _
      %p131 = scmp.lt.s32.totalorder %s16, 2
      // Predicated region
      $region21: #{tpu_custom_call.1} parent=5 // pred_check
        %p132 = pneg %p131
      $region22: #{tpu_custom_call.1} parent=5 // pred_check_branch
        %134 = sbr.rel (%p132) target = $region24
      $region23: #{tpu_custom_call.1} parent=5 // pred_region
        // Predicated region
        $region25: #{tpu_custom_call.1} parent=23 // pred_check
          %p135 = pneg %p36
        $region26: #{tpu_custom_call.1} parent=23 // pred_check_branch
          %137 = sbr.rel (%p135) target = $region28
        $region27: #{tpu_custom_call.1} parent=23 // pred_region
          %s138 = sand.u32 %s26, 1
          %s139 = scalar_lea.sflag [#allocation4], %s138
          %s140 = sand.u32 %s26, 1
          %s141 = smul.addr %s140, 8
          %s142 = scalar_lea.vmem [#allocation3], %s141
          %144 = vsyncadd %s139, 0
          %s145 = smul.addr %s16, 4
          %s146 = scalar_lea.hbm %s0, %s145
          %s147 = sshll.u32 %s146, 4
          %s148 = int_to_ptr.hbm [resolvable:$true] %s147
          %s149 = sshll.u32 %s142, 4
          %s150 = int_to_ptr.vmem [resolvable:$true] %s149
          %155 = dma.hbm_to_vmem [thread:$0]  %s148, 128, %s150, %s139, 128, 64, 4
        $region28: #{tpu_custom_call.1} parent=23 // pred_fallthru
          _
      $region24: #{tpu_custom_call.1} parent=5 // pred_fallthru
        _
      %p156 = scmp.le.s32.totalorder 1, %s16
      %p157 = scmp.lt.s32.totalorder %s16, 3
      %p158 = pnand %p156, %p157
      %p159 = pneg %p158
      // Predicated region
      $region29: #{tpu_custom_call.1} parent=5 // pred_check
        _
      $region30: #{tpu_custom_call.1} parent=5 // pred_check_branch
        %161 = sbr.rel (%p158) target = $region32
      $region31: #{tpu_custom_call.1} parent=5 // pred_region
        %s162 = ssub.s32 %s16, 1
        %s163 = sand.u32 %s29, 1
        %s164 = scalar_lea.sflag [#allocation4], %s163
        %s165 = sand.u32 %s29, 1
        %s166 = smul.addr %s165, 8
        %s167 = scalar_lea.vmem [#allocation3], %s166
        // Predicated region
        $region33: #{tpu_custom_call.1} parent=31 // pred_check
          %p168 = pneg %p42
        $region34: #{tpu_custom_call.1} parent=31 // pred_check_branch
          %170 = sbr.rel (%p168) target = $region36
        $region35: #{tpu_custom_call.1} parent=31 // pred_region
          %172 = dma.done %s164, 128
        $region36: #{tpu_custom_call.1} parent=31 // pred_fallthru
          _
        %s173 = sand.u32 %s29, 1
        %s174 = scalar_lea.sflag [#allocation4], %s173
        %s175 = sand.u32 %s29, 1
        %s176 = smul.addr %s175, 8
        %s177 = scalar_lea.vmem [#allocation3], %s176
        %p178 = pneg %p42
        %p179 = pneg %p39
        %p180 = pneg %p63
        %p181 = pneg %p60
        %p182 = pneg %p84
        %p183 = pneg %p81
        %p184 = pneg %p110
        %p185 = pneg %p107
        %s186 = sand.u32 %s97, 1
        %s187 = scalar_lea.sflag [#allocation5], %s186
        %s188 = sand.u32 %s97, 1
        %s189 = smul.addr %s188, 8
        %s190 = scalar_lea.vmem [#allocation6], %s189
        %v191 = vld [vmem:[%s167] sm:$0xf]
        %v192 = vld [vmem:[%s167 + $0x4] sm:$0xf]
        %s193 = sld [smem:[#allocation2]]
        %v194 = vld [vmem:[%s1] sm:$0xff]
        %vm195 = vcmask 31744
        %v197 = vsel %vm195, %v194, 0
        %vm199 = vcmask 1043456
        %v201 = vsel %vm199, %v191, 0
        %203 = vmatpush.msra.mxu0 0.0
        %204 = vmatpush.msra.mxu0 0.0
        %205 = vmatpush.msra.mxu0 0.0
        %206 = vmatpush.msra.mxu0 0.0
        %207 = vmatpush.msra.mxu0 0.0
        %208 = vmatpush.msra.mxu0 0.0
        %209 = vmatpush.msra.mxu0 0.0
        %210 = vmatpush.msra.mxu0 0.0
        %211 = vmatpush.msra.mxu0 0.0
        %212 = vmatpush.msra.mxu0 0.0
        %213 = vmatpush.msra.mxu0 0.0
        %214 = vmatpush.msra.mxu0 0.0
        %215 = vmatpush.msra.mxu0 0.0
        %216 = vmatpush.msra.mxu0 0.0
        %217 = vmatpush.msra.mxu0 0.0
        %218 = vmatpush.msra.mxu0 %v201
        %219 = vmatmul.f32.gmra.mxu0 %v197
        %v220 = vpop.f32.mrf.mxu0
        %v221 = vadd.f32 0.0, %v220
        %222 = vdwg.mxu0
        %v224 = vsel %vm199, %v192, 0
        %226 = vmatpush.msra.mxu0 0.0
        %227 = vmatpush.msra.mxu0 0.0
        %228 = vmatpush.msra.mxu0 0.0
        %229 = vmatpush.msra.mxu0 0.0
        %230 = vmatpush.msra.mxu0 0.0
        %231 = vmatpush.msra.mxu0 0.0
        %232 = vmatpush.msra.mxu0 0.0
        %233 = vmatpush.msra.mxu0 0.0
        %234 = vmatpush.msra.mxu0 0.0
        %235 = vmatpush.msra.mxu0 0.0
        %236 = vmatpush.msra.mxu0 0.0
        %237 = vmatpush.msra.mxu0 0.0
        %238 = vmatpush.msra.mxu0 0.0
        %239 = vmatpush.msra.mxu0 0.0
        %240 = vmatpush.msra.mxu0 0.0
        %241 = vmatpush.msra.mxu0 %v224
        %242 = vmatmul.f32.gmra.mxu0 %v197
        %v243 = vpop.f32.mrf.mxu0
        %v244 = vadd.f32 0.0, %v243
        %245 = vdwg.mxu0
        %v246 = vstv %s193
        %v247 = vadd.f32 %v221, %v246
        %v248 = vadd.f32 %v244, %v246
        %v251 = vrot.slane %v221, 1
        %v252 = vrot.slane %v244, 1
        %v255 = vsub.f32 %v247, %v251
        %v256 = vsub.f32 %v248, %v252
        %vm257 = vcmask 1040384
        %v258 = vsel %vm257, %v255, -inf
        %v259 = vsel %vm257, %v256, -inf
        %v260 = vmax.f32 %v258, %v259
        %v261 = vsub.f32 %v255, %v260
        %v262 = vsub.f32 %v256, %v260
        %v263 = vmul.f32 %v261, 1.442695
        %v264 = vpow.pop %v263
        %v265 = vmul.f32 %v262, 1.442695
        %v266 = vpow.pop %v265
        %v267 = vsel %vm257, %v264, 0.0
        %v268 = vsel %vm257, %v266, 0.0
        %v269 = vadd.f32 %v267, %v268
        %v270 = vrcp.pop %v269
        %v271 = vmul.f32 %v269, %v270
        %v272 = vsub.f32 1.0, %v271
        %v273 = vmul.f32 %v270, %v272
        %v274 = vadd.f32 %v270, %v273
        %vm275 = vweird.f32 %v269
        %vm276 = vweird.f32 %v270
        %vm277 = vmor %vm275, %vm276
        %v278 = vsel %vm277, %v270, %v274
        %v279 = vand.u32 2147483647, %v269
        %vm280 = vcmp.eq.f32.partialorder %v279, 8.507059e+37
        %v281 = vand.u32 %v269, 2147483648
        %v282 = vor.u32 1.1754944e-38, %v281
        %v283 = vsel %vm280, %v282, %v278
        %v284 = vmul.f32 %v264, %v283
        %v285 = vmul.f32 %v266, %v283
        %v286 = vmul.f32 %v247, %v284
        %v287 = vmul.f32 %v248, %v285
        %v288 = vadd.f32 %v247, %v286
        %v289 = vadd.f32 %v248, %v287
        %v290 = vxor.u32 %v288, 2147483648
        %v291 = vxor.u32 %v289, 2147483648
        %v292 = vmul.f32 %v290, 1.442695
        %v293 = vpow.pop %v292
        %v294 = vmul.f32 %v291, 1.442695
        %v295 = vpow.pop %v294
        %v296 = vadd.f32 %v293, 1.0
        %v297 = vadd.f32 %v295, 1.0
        %v298 = vrcp.pop %v296
        %v299 = vmul.f32 %v296, %v298
        %v300 = vsub.f32 1.0, %v299
        %v301 = vmul.f32 %v298, %v300
        %v302 = vadd.f32 %v298, %v301
        %vm303 = vweird.f32 %v296
        %vm304 = vweird.f32 %v298
        %vm305 = vmor %vm303, %vm304
        %v306 = vsel %vm305, %v298, %v302
        %v307 = vand.u32 2147483647, %v296
        %vm308 = vcmp.eq.f32.partialorder %v307, 8.507059e+37
        %v309 = vand.u32 %v296, 2147483648
        %v310 = vor.u32 1.1754944e-38, %v309
        %v311 = vsel %vm308, %v310, %v306
        %v312 = vmul.f32 1.0, %v311
        %v313 = vrcp.pop %v297
        %v314 = vmul.f32 %v297, %v313
        %v315 = vsub.f32 1.0, %v314
        %v316 = vmul.f32 %v313, %v315
        %v317 = vadd.f32 %v313, %v316
        %vm318 = vweird.f32 %v297
        %vm319 = vweird.f32 %v313
        %vm320 = vmor %vm318, %vm319
        %v321 = vsel %vm320, %v313, %v317
        %v322 = vand.u32 2147483647, %v297
        %vm323 = vcmp.eq.f32.partialorder %v322, 8.507059e+37
        %v324 = vand.u32 %v297, 2147483648
        %v325 = vor.u32 1.1754944e-38, %v324
        %v326 = vsel %vm323, %v325, %v321
        %v327 = vmul.f32 1.0, %v326
        %v328 = vperm.slane %v312, 0
        %v329 = vperm.slane %v327, 0
        %v330 = vmul.f32 %v191, %v328
        %v331 = vmul.f32 %v192, %v329
        %332 = vst [vmem:[%s190] sm:$0xf] %v330
        %333 = vst [vmem:[%s190 + $0x4] sm:$0xf] %v331
        %s334 = sand.u32 %s97, 1
        %s335 = scalar_lea.sflag [#allocation5], %s334
        %s336 = sand.u32 %s97, 1
        %s337 = smul.addr %s336, 8
        %s338 = scalar_lea.vmem [#allocation6], %s337
        // Predicated region
        $region37: #{tpu_custom_call.1} parent=31 // pred_check
          %p339 = pneg %p107
        $region38: #{tpu_custom_call.1} parent=31 // pred_check_branch
          %341 = sbr.rel (%p339) target = $region40
        $region39: #{tpu_custom_call.1} parent=31 // pred_region
          %343 = vsyncadd %s335, 0
          %s344 = smul.addr %s21, 4
          %s345 = scalar_lea.hbm %s3, %s344
          %s346 = sshll.u32 %s338, 4
          %s347 = int_to_ptr.vmem [resolvable:$true] %s346
          %s348 = sshll.u32 %s345, 4
          %s349 = int_to_ptr.hbm [resolvable:$true] %s348
          %354 = dma.vmem_to_hbm [thread:$0]  %s347, 128, %s349, %s335, 64, 128, 4
        $region40: #{tpu_custom_call.1} parent=31 // pred_fallthru
          _
      $region32: #{tpu_custom_call.1} parent=5 // pred_fallthru
        _
      %p355 = scmp.le.s32.totalorder 2, %s16
      // Predicated region
      $region41: #{tpu_custom_call.1} parent=5 // pred_check
        %p356 = pneg %p355
      $region42: #{tpu_custom_call.1} parent=5 // pred_check_branch
        %358 = sbr.rel (%p356) target = $region44
      $region43: #{tpu_custom_call.1} parent=5 // pred_region
        %s359 = ssub.s32 %s16, 2
        // Predicated region
        $region45: #{tpu_custom_call.1} parent=43 // pred_check
          %p360 = pneg %p113
        $region46: #{tpu_custom_call.1} parent=43 // pred_check_branch
          %362 = sbr.rel (%p360) target = $region48
        $region47: #{tpu_custom_call.1} parent=43 // pred_region
          %s363 = sand.u32 %s98, 1
          %s364 = scalar_lea.sflag [#allocation5], %s363
          %s365 = sand.u32 %s98, 1
          %s366 = smul.addr %s365, 8
          %s367 = scalar_lea.vmem [#allocation6], %s366
          %369 = dma.done %s364, 128
        $region48: #{tpu_custom_call.1} parent=43 // pred_fallthru
          _
      $region44: #{tpu_custom_call.1} parent=5 // pred_fallthru
        _
    $region6: #{tpu_custom_call.1} parent=1 // loop_footer
      %s20 = sadd.s32 1, %s16
    $region7: #{tpu_custom_call.1} parent=1 // loop_footer_branch
      %15 = sbr.rel target = $region3
    $region8: #{tpu_custom_call.1} parent=1 // loop_exit
      _
    %370 = vsyncpa [#allocation4], 1
    %s371 = scalar_lea.sflag [#allocation4], 1
    %372 = vsyncpa %s371, 1
    %373 = vsyncpa [#allocation5], 1
    %s374 = scalar_lea.sflag [#allocation5], 1
    %375 = vsyncpa %s374, 1

</llo_original>
